<compile_context>
chip_gen: v6e
topology: v6e:2x2x1
jax: 0.10.0
libtpu: 0.0.40
codegen_flags: <defaults>
</compile_context>

<pallas_src>
import functools

import jax
import jax.numpy as jnp
from jax import lax
from jax.experimental import pallas as pl
from jax.experimental.pallas import tpu as pltpu


def sepconv2d_kernel(x_ref, shift_ref, wdw_ref, wpw_ref, o_ref,
                     *, H, W, C, Cout, K, PAD):
    """One batch element per grid step, spatial-flattened (lane-dense) layout.

    x_ref     : (1, C, H*W)      input (NCHW flattened over the lane axis)
    shift_ref : (C, 1)           per-channel BN shift / scale (added to x)
    wdw_ref   : (K*K, C, 1)      depthwise weights with BN scale pre-folded
    wpw_ref   : (C, Cout, 1)     pointwise 1x1 conv weights
    o_ref     : (1, Cout, H*W)   output (NCHW flattened)
    """
    HW = H * W

    # --- BatchNorm shift (scale is already folded into the depthwise weights) --
    xn = x_ref[0] + shift_ref[...]                        # (C, HW), f32

    # --- border index maps for the implicit zero padding (computed once) -------
    lane = lax.broadcasted_iota(jnp.int32, (1, HW), 1)
    if (W & (W - 1)) == 0:                                # W power of two: cheap bit ops
        h_idx = lane >> (W.bit_length() - 1)
        w_idx = lane & (W - 1)
    else:
        h_idx = lane // W
        w_idx = lane % W

    def tap_value(dh, dw):
        # BN-shifted input sampled at (h+dh, w+dw); 0 outside the image.
        s = dh * W + dw
        v = xn if s == 0 else pltpu.roll(xn, shift=(-s) % HW, axis=1)
        mask = None

        def _and(m, new):
            return new if m is None else m & new

        if dh > 0:
            mask = _and(mask, h_idx < H - dh)
        elif dh < 0:
            mask = _and(mask, h_idx >= -dh)
        if dw > 0:
            mask = _and(mask, w_idx < W - dw)
        elif dw < 0:
            mask = _and(mask, w_idx >= -dw)
        if mask is not None:
            v = jnp.where(mask, v, 0.0)
        return v                                          # (C, HW)

    # --- depthwise KxK conv: roll + mask + FMA taps (XLU + VPU, no scratch) ----
    dw_acc = None
    for kh in range(K):
        for kw in range(K):
            t = kh * K + kw
            term = tap_value(kh - PAD, kw - PAD) * wdw_ref[t]   # (C,HW) * (C,1)
            dw_acc = term if dw_acc is None else dw_acc + term

    # --- pointwise 1x1 conv as C broadcast FMAs on the VPU (no MXU) + ReLU -----
    acc = None
    for ci in range(C):
        term = wpw_ref[ci] * dw_acc[ci:ci + 1, :]         # (Cout,1) * (1,HW)
        acc = term if acc is None else acc + term
    o_ref[0] = jnp.maximum(acc, 0.0).astype(o_ref.dtype)  # lane-dense store


def sep_conv2d_forward(x_nchw, gamma, beta, w_dw, w_pw, *, eps=1e-3, pad=1):
    """SepConv2d.forward with default stride=1, padding=1, bias=False."""
    N, C, H, W = x_nchw.shape
    K = w_dw.shape[0]
    Cout = w_pw.shape[1]
    HW = H * W

    x32 = x_nchw.astype(jnp.float32)

    # Training-mode BatchNorm batch statistics (glue), folded to scale/shift.
    mean = jnp.mean(x32, axis=(0, 2, 3))
    var = jnp.var(x32, axis=(0, 2, 3))                    # biased, matches PyTorch train mode
    scale = gamma.astype(jnp.float32) / jnp.sqrt(var + eps)   # (C,), > 0 for gamma=1
    shift = beta.astype(jnp.float32) - mean * scale           # (C,)

    # Fold BN scale into the depthwise weights; the leftover per-channel shift
    # becomes a single add in-kernel:
    #   conv(zero_pad(scale*x + shift), wdw) == conv(mask(x + shift/scale), wdw*scale)
    wdw_folded = (w_dw.astype(jnp.float32) * scale[None, None, :]).reshape(K * K, C, 1)
    shift_prime = (shift / scale).reshape(C, 1)
    wpw_r = w_pw.astype(jnp.float32)[:, :, None]          # (C, Cout, 1)

    x_flat = x32.reshape(N, C, HW)                        # NCHW, spatial flattened on lanes

    kernel = functools.partial(sepconv2d_kernel,
                               H=H, W=W, C=C, Cout=Cout, K=K, PAD=pad)

    out_flat = pl.pallas_call(
        kernel,
        out_shape=jax.ShapeDtypeStruct((N, Cout, HW), jnp.float32),
        grid_spec=pltpu.PrefetchScalarGridSpec(
            num_scalar_prefetch=0,
            grid=(N,),                                    # "parallel" -> both TCs on v7x
            in_specs=[
                pl.BlockSpec((1, C, HW), lambda n: (n, 0, 0)),
                pl.BlockSpec((C, 1), lambda n: (0, 0)),
                pl.BlockSpec((K * K, C, 1), lambda n: (0, 0, 0)),
                pl.BlockSpec((C, Cout, 1), lambda n: (0, 0, 0)),
            ],
            out_specs=pl.BlockSpec((1, Cout, HW), lambda n: (n, 0, 0)),
        ),
        compiler_params=pltpu.CompilerParams(
            dimension_semantics=("parallel",)),
    )(x_flat, shift_prime, wdw_folded, wpw_r)

    return out_flat.reshape(N, Cout, H, W)                # already NCHW, no transpose


def ref_forward(x, gamma, beta, w_dw, w_pw, eps=1e-3):
    """Pure-JAX reference mirroring the PyTorch forward (NCHW)."""
    _, C, _, _ = x.shape
    mean = jnp.mean(x, axis=(0, 2, 3), keepdims=True)
    var = jnp.var(x, axis=(0, 2, 3), keepdims=True)
    y = gamma[None, :, None, None] * (x - mean) / jnp.sqrt(var + eps) \
        + beta[None, :, None, None]
    w_dw_oihw = jnp.transpose(w_dw, (2, 0, 1))[:, None, :, :]       # (C, 1, K, K)
    dw = lax.conv_general_dilated(y, w_dw_oihw, (1, 1), [(1, 1), (1, 1)],
                                  dimension_numbers=('NCHW', 'OIHW', 'NCHW'),
                                  feature_group_count=C)
    w_pw_oihw = jnp.transpose(w_pw, (1, 0))[:, :, None, None]       # (Cout, Cin, 1, 1)
    pw = lax.conv_general_dilated(dw, w_pw_oihw, (1, 1), [(0, 0), (0, 0)],
                                  dimension_numbers=('NCHW', 'OIHW', 'NCHW'))
    return jnp.maximum(pw, 0.0)


if __name__ == "__main__":
    N, C, H, W = 2, 4, 16, 16          # in_channels == out_channels (required by bn(x))
    Cout, K = 4, 3

    key = jax.random.PRNGKey(0)
    k1, k2, k3 = jax.random.split(key, 3)
    x = jax.random.normal(k1, (N, C, H, W), jnp.float32)
    w_dw = 0.1 * jax.random.normal(k2, (K, K, C), jnp.float32)      # depthwise weights
    w_pw = 0.1 * jax.random.normal(k3, (C, Cout), jnp.float32)      # pointwise weights
    gamma = jnp.ones((C,), jnp.float32)                             # BN default affine
    beta = jnp.zeros((C,), jnp.float32)

    out = sep_conv2d_forward(x, gamma, beta, w_dw, w_pw)
    out = jax.block_until_ready(out)

    ref = ref_forward(x, gamma, beta, w_dw, w_pw)
    assert out.shape == (N, Cout, H, W), out.shape
    assert jnp.allclose(out, ref, atol=1e-4, rtol=1e-4), \
        float(jnp.max(jnp.abs(out - ref)))

    # TODO(synk): `depthwise_s1` exists in __init__ but is unused in forward, so it
    # is intentionally not implemented.
    print("KERNEL_OK")
</pallas_src>

<mosaic_0001>
module attributes {stable_mosaic.version = 11 : i64} {
  func.func @sepconv2d_kernel(%arg0: i32, %arg1: memref<1x4x256xf32, #tpu.memory_space<vmem>>, %arg2: memref<4x1xf32, #tpu.memory_space<vmem>>, %arg3: memref<9x4x1xf32, #tpu.memory_space<vmem>>, %arg4: memref<4x4x1xf32, #tpu.memory_space<vmem>>, %arg5: memref<1x4x256xf32, #tpu.memory_space<vmem>>) attributes {dimension_semantics = [#tpu.dimension_semantics<parallel>], iteration_bounds = array<i64: 2>, scalar_prefetch = 0 : i64, scratch_operands = 0 : i64, tpu.core_type = #tpu.core_type<tc>, window_params = [{transform_indices = @transform_0, window_bounds = array<i64: 1, 4, 256>}, {pipeline_mode = #tpu.pipeline_mode<synchronous>, transform_indices = @transform_1, window_bounds = array<i64: 4, 1>}, {pipeline_mode = #tpu.pipeline_mode<synchronous>, transform_indices = @transform_2, window_bounds = array<i64: 9, 4, 1>}, {pipeline_mode = #tpu.pipeline_mode<synchronous>, transform_indices = @transform_3, window_bounds = array<i64: 4, 4, 1>}, {transform_indices = @transform_4, window_bounds = array<i64: 1, 4, 256>}]} {
    %c0 = arith.constant 0 : index
    %c0_0 = arith.constant 0 : index
    %c0_1 = arith.constant 0 : index
    %0 = vector.load %arg1[%c0, %c0_0, %c0_1] : memref<1x4x256xf32, #tpu.memory_space<vmem>>, vector<1x4x256xf32>
    %1 = vector.shape_cast %0 : vector<1x4x256xf32> to vector<4x256xf32>
    %c0_2 = arith.constant 0 : index
    %c0_3 = arith.constant 0 : index
    %2 = vector.load %arg2[%c0_2, %c0_3] : memref<4x1xf32, #tpu.memory_space<vmem>>, vector<4x1xf32>
    %3 = vector.broadcast %2 : vector<4x1xf32> to vector<4x256xf32>
    %4 = arith.addf %1, %3 : vector<4x256xf32>
    %5 = tpu.iota {dimensions = array<i32: 1>} : vector<1x256xi32>
    %c4_i32 = arith.constant 4 : i32
    %6 = vector.broadcast %c4_i32 : i32 to vector<1x256xi32>
    %7 = arith.shrsi %5, %6 : vector<1x256xi32>
    %c15_i32 = arith.constant 15 : i32
    %8 = vector.broadcast %c15_i32 : i32 to vector<1x256xi32>
    %9 = arith.andi %5, %8 : vector<1x256xi32>
    %c17_i32 = arith.constant 17 : i32
    %10 = tpu.dynamic_rotate %4 by %c17_i32 dim 1 : vector<4x256xf32>, i32 -> vector<4x256xf32>
    %c1_i32 = arith.constant 1 : i32
    %11 = vector.broadcast %c1_i32 : i32 to vector<1x256xi32>
    %12 = arith.cmpi sge, %7, %11 : vector<1x256xi32>
    %c1_i32_4 = arith.constant 1 : i32
    %13 = vector.broadcast %c1_i32_4 : i32 to vector<1x256xi32>
    %14 = arith.cmpi sge, %9, %13 : vector<1x256xi32>
    %15 = arith.andi %12, %14 : vector<1x256xi1>
    %cst = arith.constant 0.000000e+00 : f32
    %16 = vector.shape_cast %15 : vector<1x256xi1> to vector<1x256xi1>
    %17 = vector.broadcast %16 : vector<1x256xi1> to vector<4x256xi1>
    %18 = vector.broadcast %cst : f32 to vector<4x256xf32>
    %19 = arith.select %17, %10, %18 : vector<4x256xi1>, vector<4x256xf32>
    %c0_5 = arith.constant 0 : index
    %c0_6 = arith.constant 0 : index
    %c0_7 = arith.constant 0 : index
    %20 = vector.load %arg3[%c0_5, %c0_6, %c0_7] : memref<9x4x1xf32, #tpu.memory_space<vmem>>, vector<1x4x1xf32>
    %21 = vector.shape_cast %20 : vector<1x4x1xf32> to vector<4x1xf32>
    %22 = vector.broadcast %21 : vector<4x1xf32> to vector<4x256xf32>
    %23 = arith.mulf %19, %22 : vector<4x256xf32>
    %c16_i32 = arith.constant 16 : i32
    %24 = tpu.dynamic_rotate %4 by %c16_i32 dim 1 : vector<4x256xf32>, i32 -> vector<4x256xf32>
    %c1_i32_8 = arith.constant 1 : i32
    %25 = vector.broadcast %c1_i32_8 : i32 to vector<1x256xi32>
    %26 = arith.cmpi sge, %7, %25 : vector<1x256xi32>
    %cst_9 = arith.constant 0.000000e+00 : f32
    %27 = vector.shape_cast %26 : vector<1x256xi1> to vector<1x256xi1>
    %28 = vector.broadcast %27 : vector<1x256xi1> to vector<4x256xi1>
    %29 = vector.broadcast %cst_9 : f32 to vector<4x256xf32>
    %30 = arith.select %28, %24, %29 : vector<4x256xi1>, vector<4x256xf32>
    %c1 = arith.constant 1 : index
    %c0_10 = arith.constant 0 : index
    %c0_11 = arith.constant 0 : index
    %31 = vector.load %arg3[%c1, %c0_10, %c0_11] : memref<9x4x1xf32, #tpu.memory_space<vmem>>, vector<1x4x1xf32>
    %32 = vector.shape_cast %31 : vector<1x4x1xf32> to vector<4x1xf32>
    %33 = vector.broadcast %32 : vector<4x1xf32> to vector<4x256xf32>
    %34 = arith.mulf %30, %33 : vector<4x256xf32>
    %35 = arith.addf %23, %34 : vector<4x256xf32>
    %c15_i32_12 = arith.constant 15 : i32
    %36 = tpu.dynamic_rotate %4 by %c15_i32_12 dim 1 : vector<4x256xf32>, i32 -> vector<4x256xf32>
    %c1_i32_13 = arith.constant 1 : i32
    %37 = vector.broadcast %c1_i32_13 : i32 to vector<1x256xi32>
    %38 = arith.cmpi sge, %7, %37 : vector<1x256xi32>
    %c15_i32_14 = arith.constant 15 : i32
    %39 = vector.broadcast %c15_i32_14 : i32 to vector<1x256xi32>
    %40 = arith.cmpi slt, %9, %39 : vector<1x256xi32>
    %41 = arith.andi %38, %40 : vector<1x256xi1>
    %cst_15 = arith.constant 0.000000e+00 : f32
    %42 = vector.shape_cast %41 : vector<1x256xi1> to vector<1x256xi1>
    %43 = vector.broadcast %42 : vector<1x256xi1> to vector<4x256xi1>
    %44 = vector.broadcast %cst_15 : f32 to vector<4x256xf32>
    %45 = arith.select %43, %36, %44 : vector<4x256xi1>, vector<4x256xf32>
    %c2 = arith.constant 2 : index
    %c0_16 = arith.constant 0 : index
    %c0_17 = arith.constant 0 : index
    %46 = vector.load %arg3[%c2, %c0_16, %c0_17] : memref<9x4x1xf32, #tpu.memory_space<vmem>>, vector<1x4x1xf32>
    %47 = vector.shape_cast %46 : vector<1x4x1xf32> to vector<4x1xf32>
    %48 = vector.broadcast %47 : vector<4x1xf32> to vector<4x256xf32>
    %49 = arith.mulf %45, %48 : vector<4x256xf32>
    %50 = arith.addf %35, %49 : vector<4x256xf32>
    %c1_i32_18 = arith.constant 1 : i32
    %51 = tpu.dynamic_rotate %4 by %c1_i32_18 dim 1 : vector<4x256xf32>, i32 -> vector<4x256xf32>
    %c1_i32_19 = arith.constant 1 : i32
    %52 = vector.broadcast %c1_i32_19 : i32 to vector<1x256xi32>
    %53 = arith.cmpi sge, %9, %52 : vector<1x256xi32>
    %cst_20 = arith.constant 0.000000e+00 : f32
    %54 = vector.shape_cast %53 : vector<1x256xi1> to vector<1x256xi1>
    %55 = vector.broadcast %54 : vector<1x256xi1> to vector<4x256xi1>
    %56 = vector.broadcast %cst_20 : f32 to vector<4x256xf32>
    %57 = arith.select %55, %51, %56 : vector<4x256xi1>, vector<4x256xf32>
    %c3 = arith.constant 3 : index
    %c0_21 = arith.constant 0 : index
    %c0_22 = arith.constant 0 : index
    %58 = vector.load %arg3[%c3, %c0_21, %c0_22] : memref<9x4x1xf32, #tpu.memory_space<vmem>>, vector<1x4x1xf32>
    %59 = vector.shape_cast %58 : vector<1x4x1xf32> to vector<4x1xf32>
    %60 = vector.broadcast %59 : vector<4x1xf32> to vector<4x256xf32>
    %61 = arith.mulf %57, %60 : vector<4x256xf32>
    %62 = arith.addf %50, %61 : vector<4x256xf32>
    %c4 = arith.constant 4 : index
    %c0_23 = arith.constant 0 : index
    %c0_24 = arith.constant 0 : index
    %63 = vector.load %arg3[%c4, %c0_23, %c0_24] : memref<9x4x1xf32, #tpu.memory_space<vmem>>, vector<1x4x1xf32>
    %64 = vector.shape_cast %63 : vector<1x4x1xf32> to vector<4x1xf32>
    %65 = vector.broadcast %64 : vector<4x1xf32> to vector<4x256xf32>
    %66 = arith.mulf %4, %65 : vector<4x256xf32>
    %67 = arith.addf %62, %66 : vector<4x256xf32>
    %c255_i32 = arith.constant 255 : i32
    %68 = tpu.dynamic_rotate %4 by %c255_i32 dim 1 : vector<4x256xf32>, i32 -> vector<4x256xf32>
    %c15_i32_25 = arith.constant 15 : i32
    %69 = vector.broadcast %c15_i32_25 : i32 to vector<1x256xi32>
    %70 = arith.cmpi slt, %9, %69 : vector<1x256xi32>
    %cst_26 = arith.constant 0.000000e+00 : f32
    %71 = vector.shape_cast %70 : vector<1x256xi1> to vector<1x256xi1>
    %72 = vector.broadcast %71 : vector<1x256xi1> to vector<4x256xi1>
    %73 = vector.broadcast %cst_26 : f32 to vector<4x256xf32>
    %74 = arith.select %72, %68, %73 : vector<4x256xi1>, vector<4x256xf32>
    %c5 = arith.constant 5 : index
    %c0_27 = arith.constant 0 : index
    %c0_28 = arith.constant 0 : index
    %75 = vector.load %arg3[%c5, %c0_27, %c0_28] : memref<9x4x1xf32, #tpu.memory_space<vmem>>, vector<1x4x1xf32>
    %76 = vector.shape_cast %75 : vector<1x4x1xf32> to vector<4x1xf32>
    %77 = vector.broadcast %76 : vector<4x1xf32> to vector<4x256xf32>
    %78 = arith.mulf %74, %77 : vector<4x256xf32>
    %79 = arith.addf %67, %78 : vector<4x256xf32>
    %c241_i32 = arith.constant 241 : i32
    %80 = tpu.dynamic_rotate %4 by %c241_i32 dim 1 : vector<4x256xf32>, i32 -> vector<4x256xf32>
    %c15_i32_29 = arith.constant 15 : i32
    %81 = vector.broadcast %c15_i32_29 : i32 to vector<1x256xi32>
    %82 = arith.cmpi slt, %7, %81 : vector<1x256xi32>
    %c1_i32_30 = arith.constant 1 : i32
    %83 = vector.broadcast %c1_i32_30 : i32 to vector<1x256xi32>
    %84 = arith.cmpi sge, %9, %83 : vector<1x256xi32>
    %85 = arith.andi %82, %84 : vector<1x256xi1>
    %cst_31 = arith.constant 0.000000e+00 : f32
    %86 = vector.shape_cast %85 : vector<1x256xi1> to vector<1x256xi1>
    %87 = vector.broadcast %86 : vector<1x256xi1> to vector<4x256xi1>
    %88 = vector.broadcast %cst_31 : f32 to vector<4x256xf32>
    %89 = arith.select %87, %80, %88 : vector<4x256xi1>, vector<4x256xf32>
    %c6 = arith.constant 6 : index
    %c0_32 = arith.constant 0 : index
    %c0_33 = arith.constant 0 : index
    %90 = vector.load %arg3[%c6, %c0_32, %c0_33] : memref<9x4x1xf32, #tpu.memory_space<vmem>>, vector<1x4x1xf32>
    %91 = vector.shape_cast %90 : vector<1x4x1xf32> to vector<4x1xf32>
    %92 = vector.broadcast %91 : vector<4x1xf32> to vector<4x256xf32>
    %93 = arith.mulf %89, %92 : vector<4x256xf32>
    %94 = arith.addf %79, %93 : vector<4x256xf32>
    %c240_i32 = arith.constant 240 : i32
    %95 = tpu.dynamic_rotate %4 by %c240_i32 dim 1 : vector<4x256xf32>, i32 -> vector<4x256xf32>
    %c15_i32_34 = arith.constant 15 : i32
    %96 = vector.broadcast %c15_i32_34 : i32 to vector<1x256xi32>
    %97 = arith.cmpi slt, %7, %96 : vector<1x256xi32>
    %cst_35 = arith.constant 0.000000e+00 : f32
    %98 = vector.shape_cast %97 : vector<1x256xi1> to vector<1x256xi1>
    %99 = vector.broadcast %98 : vector<1x256xi1> to vector<4x256xi1>
    %100 = vector.broadcast %cst_35 : f32 to vector<4x256xf32>
    %101 = arith.select %99, %95, %100 : vector<4x256xi1>, vector<4x256xf32>
    %c7 = arith.constant 7 : index
    %c0_36 = arith.constant 0 : index
    %c0_37 = arith.constant 0 : index
    %102 = vector.load %arg3[%c7, %c0_36, %c0_37] : memref<9x4x1xf32, #tpu.memory_space<vmem>>, vector<1x4x1xf32>
    %103 = vector.shape_cast %102 : vector<1x4x1xf32> to vector<4x1xf32>
    %104 = vector.broadcast %103 : vector<4x1xf32> to vector<4x256xf32>
    %105 = arith.mulf %101, %104 : vector<4x256xf32>
    %106 = arith.addf %94, %105 : vector<4x256xf32>
    %c239_i32 = arith.constant 239 : i32
    %107 = tpu.dynamic_rotate %4 by %c239_i32 dim 1 : vector<4x256xf32>, i32 -> vector<4x256xf32>
    %c15_i32_38 = arith.constant 15 : i32
    %108 = vector.broadcast %c15_i32_38 : i32 to vector<1x256xi32>
    %109 = arith.cmpi slt, %7, %108 : vector<1x256xi32>
    %c15_i32_39 = arith.constant 15 : i32
    %110 = vector.broadcast %c15_i32_39 : i32 to vector<1x256xi32>
    %111 = arith.cmpi slt, %9, %110 : vector<1x256xi32>
    %112 = arith.andi %109, %111 : vector<1x256xi1>
    %cst_40 = arith.constant 0.000000e+00 : f32
    %113 = vector.shape_cast %112 : vector<1x256xi1> to vector<1x256xi1>
    %114 = vector.broadcast %113 : vector<1x256xi1> to vector<4x256xi1>
    %115 = vector.broadcast %cst_40 : f32 to vector<4x256xf32>
    %116 = arith.select %114, %107, %115 : vector<4x256xi1>, vector<4x256xf32>
    %c8 = arith.constant 8 : index
    %c0_41 = arith.constant 0 : index
    %c0_42 = arith.constant 0 : index
    %117 = vector.load %arg3[%c8, %c0_41, %c0_42] : memref<9x4x1xf32, #tpu.memory_space<vmem>>, vector<1x4x1xf32>
    %118 = vector.shape_cast %117 : vector<1x4x1xf32> to vector<4x1xf32>
    %119 = vector.broadcast %118 : vector<4x1xf32> to vector<4x256xf32>
    %120 = arith.mulf %116, %119 : vector<4x256xf32>
    %121 = arith.addf %106, %120 : vector<4x256xf32>
    %c0_43 = arith.constant 0 : index
    %c0_44 = arith.constant 0 : index
    %c0_45 = arith.constant 0 : index
    %122 = vector.load %arg4[%c0_43, %c0_44, %c0_45] : memref<4x4x1xf32, #tpu.memory_space<vmem>>, vector<1x4x1xf32>
    %123 = vector.shape_cast %122 : vector<1x4x1xf32> to vector<4x1xf32>
    %124 = vector.extract_strided_slice %121 {offsets = [0, 0], sizes = [1, 256], strides = [1, 1]} : vector<4x256xf32> to vector<1x256xf32>
    %125 = vector.broadcast %123 : vector<4x1xf32> to vector<4x256xf32>
    %126 = vector.broadcast %124 : vector<1x256xf32> to vector<4x256xf32>
    %127 = arith.mulf %125, %126 : vector<4x256xf32>
    %c1_46 = arith.constant 1 : index
    %c0_47 = arith.constant 0 : index
    %c0_48 = arith.constant 0 : index
    %128 = vector.load %arg4[%c1_46, %c0_47, %c0_48] : memref<4x4x1xf32, #tpu.memory_space<vmem>>, vector<1x4x1xf32>
    %129 = vector.shape_cast %128 : vector<1x4x1xf32> to vector<4x1xf32>
    %130 = vector.extract_strided_slice %121 {offsets = [1, 0], sizes = [1, 256], strides = [1, 1]} : vector<4x256xf32> to vector<1x256xf32>
    %131 = vector.broadcast %129 : vector<4x1xf32> to vector<4x256xf32>
    %132 = vector.broadcast %130 : vector<1x256xf32> to vector<4x256xf32>
    %133 = arith.mulf %131, %132 : vector<4x256xf32>
    %134 = arith.addf %127, %133 : vector<4x256xf32>
    %c2_49 = arith.constant 2 : index
    %c0_50 = arith.constant 0 : index
    %c0_51 = arith.constant 0 : index
    %135 = vector.load %arg4[%c2_49, %c0_50, %c0_51] : memref<4x4x1xf32, #tpu.memory_space<vmem>>, vector<1x4x1xf32>
    %136 = vector.shape_cast %135 : vector<1x4x1xf32> to vector<4x1xf32>
    %137 = vector.extract_strided_slice %121 {offsets = [2, 0], sizes = [1, 256], strides = [1, 1]} : vector<4x256xf32> to vector<1x256xf32>
    %138 = vector.broadcast %136 : vector<4x1xf32> to vector<4x256xf32>
    %139 = vector.broadcast %137 : vector<1x256xf32> to vector<4x256xf32>
    %140 = arith.mulf %138, %139 : vector<4x256xf32>
    %141 = arith.addf %134, %140 : vector<4x256xf32>
    %c3_52 = arith.constant 3 : index
    %c0_53 = arith.constant 0 : index
    %c0_54 = arith.constant 0 : index
    %142 = vector.load %arg4[%c3_52, %c0_53, %c0_54] : memref<4x4x1xf32, #tpu.memory_space<vmem>>, vector<1x4x1xf32>
    %143 = vector.shape_cast %142 : vector<1x4x1xf32> to vector<4x1xf32>
    %144 = vector.extract_strided_slice %121 {offsets = [3, 0], sizes = [1, 256], strides = [1, 1]} : vector<4x256xf32> to vector<1x256xf32>
    %145 = vector.broadcast %143 : vector<4x1xf32> to vector<4x256xf32>
    %146 = vector.broadcast %144 : vector<1x256xf32> to vector<4x256xf32>
    %147 = arith.mulf %145, %146 : vector<4x256xf32>
    %148 = arith.addf %141, %147 : vector<4x256xf32>
    %cst_55 = arith.constant 0.000000e+00 : f32
    %149 = vector.broadcast %cst_55 : f32 to vector<4x256xf32>
    %150 = arith.maximumf %148, %149 : vector<4x256xf32>
    %c0_56 = arith.constant 0 : index
    %c0_57 = arith.constant 0 : index
    %c0_58 = arith.constant 0 : index
    %151 = vector.load %arg5[%c0_56, %c0_57, %c0_58] : memref<1x4x256xf32, #tpu.memory_space<vmem>>, vector<1x4x256xf32>
    %152 = vector.shape_cast %151 : vector<1x4x256xf32> to vector<4x256xf32>
    %153 = vector.shape_cast %150 : vector<4x256xf32> to vector<1x4x256xf32>
    tpu.vector_store %arg5[%c0_56, %c0_57, %c0_58], %153 {strides = array<i32>} : memref<1x4x256xf32, #tpu.memory_space<vmem>>, vector<1x4x256xf32>,
    return
  }
  func.func @transform_0(%arg0: i32) -> (i32, i32, i32) {
    %c0_i32 = arith.constant 0 : i32
    %c0_i32_0 = arith.constant 0 : i32
    %c0_i32_1 = arith.constant 0 : i32
    return %arg0, %c0_i32, %c0_i32_0 : i32, i32, i32
  }
  func.func @transform_1(%arg0: i32) -> (i32, i32) {
    %c0_i32 = arith.constant 0 : i32
    %c0_i32_0 = arith.constant 0 : i32
    %c0_i32_1 = arith.constant 0 : i32
    return %c0_i32, %c0_i32_0 : i32, i32
  }
  func.func @transform_2(%arg0: i32) -> (i32, i32, i32) {
    %c0_i32 = arith.constant 0 : i32
    %c0_i32_0 = arith.constant 0 : i32
    %c0_i32_1 = arith.constant 0 : i32
    %c0_i32_2 = arith.constant 0 : i32
    return %c0_i32, %c0_i32_0, %c0_i32_1 : i32, i32, i32
  }
  func.func @transform_3(%arg0: i32) -> (i32, i32, i32) {
    %c0_i32 = arith.constant 0 : i32
    %c0_i32_0 = arith.constant 0 : i32
    %c0_i32_1 = arith.constant 0 : i32
    %c0_i32_2 = arith.constant 0 : i32
    return %c0_i32, %c0_i32_0, %c0_i32_1 : i32, i32, i32
  }
  func.func @transform_4(%arg0: i32) -> (i32, i32, i32) {
    %c0_i32 = arith.constant 0 : i32
    %c0_i32_0 = arith.constant 0 : i32
    %c0_i32_1 = arith.constant 0 : i32
    return %arg0, %c0_i32, %c0_i32_0 : i32, i32, i32
  }
}

</mosaic_0001>

<llo_original>
// kernel: tpu_custom_call.1
$region0: #{tpu_custom_call.1}
  #allocation0 [shape = 'u32[]', space=smem, size = 0x4, offset = 0x4, fixed_abs, tag = 'smem constant byte address 0x4 - core index']
  #allocation1 [shape = 'u32[144,128]{1,0:T(1,128)}', space=vmem, size = 0x12000, scoped, tag = 'internal scratch']
  %s0 = inlined_call_operand.vmem [shape: f32[2,4,256], index: 0, kind: input, shape index: {}]
  %s1 = inlined_call_operand.vmem [shape: f32[4,1], index: 1, kind: input, shape index: {}]
  %s2 = inlined_call_operand.vmem [shape: f32[9,4,1], index: 2, kind: input, shape index: {}]
  %s3 = inlined_call_operand.vmem [shape: f32[4,4,1], index: 3, kind: input, shape index: {}]
  %s4 = inlined_call_operand.hbm [shape: f32[2,4,256], index: 4, kind: output, shape index: {}]
  %s5 = sld [smem:[#allocation0]]
  $region49: #{tpu_custom_call.1} parent=0
    _
  %s7 = ssub.s32 1, %s5
  %s8 = scalar_select 0, %s7, %s5
  $region1: #{tpu_custom_call.1} parent=0
    #allocation2 [shape = 'u8[8192]{0}', space=vmem, size = 0x2000, scoped, tag = 'output window, operand 0']
    #allocation3 [shape = 's32[2]{0}', space=sflag, size = 0x8, scoped, tag = 'scoped memory for tpu_custom_call.1']
    %9 = vsyncpa [#allocation3], 0
    %s10 = scalar_lea.sflag [#allocation3], 1
    %11 = vsyncpa %s10, 0
    loop: start=0, step=1, limit=4
    $region2: #{tpu_custom_call.1} parent=1 // loop_pre_header
      _
    $region3: #{tpu_custom_call.1} parent=1 // loop_header
      %s13 = sphi 0, %s17
      %p14 = scmp.ge.s32.totalorder %s13, 4
      %s23 = sphi 0, %s25
      %s26 = sphi 0, %s23
      %s27 = sphi 0, %s26
      %s43 = sphi 0, %s27
      %s47 = sphi 0, %s47
      %s49 = sphi 0, %s47
      %s50 = sphi 0, %s49
      %s64 = sphi 0, %s50
      %s68 = sphi 0, %s68
      %s70 = sphi 0, %s68
      %s71 = sphi 0, %s70
      %s85 = sphi 0, %s71
      %s89 = sphi 0, %s89
      %s91 = sphi 0, %s89
      %s92 = sphi 0, %s91
      %s106 = sphi 0, %s92
      %s112 = sphi 0, %s114
      %s115 = sphi 0, %s112
      %s116 = sphi 0, %s115
      %s132 = sphi 0, %s116
    $region4: #{tpu_custom_call.1} parent=1 // loop_header_branch
      %16 = sbr.rel (%p14) target = $region8
    $region5: #{tpu_custom_call.1} parent=1 // loop_body
      %s18 = ssub.s32 %s13, 1
      %s19 = ssub.s32 %s13, 2
      %s20 = sadd.s32 %s13, 1
      %s21 = ssub.s32 %s13, %s20
      %p22 = scmp.eq.s32.totalorder %s21, 0
      %s24 = sadd.s32 %s23, 1
      %s25 = scalar_select %p22, %s23, %s24
      %p28 = pneg %p22
      %p29 = scmp.eq.s32.totalorder %s13, 1
      %p30 = por %p28, %p29
      %p31 = scmp.ne.s32.totalorder %s23, %s26
      %p32 = scmp.eq.s32.totalorder %s13, 0
      %p33 = por %p31, %p32
      %p34 = scmp.ne.s32.totalorder %s23, %s26
      %p35 = scmp.eq.s32.totalorder %s18, 1
      %p36 = por %p34, %p35
      %p37 = scmp.ne.s32.totalorder %s26, %s27
      %p38 = scmp.eq.s32.totalorder %s18, 0
      %p39 = por %p37, %p38
      %p40 = scmp.ne.s32.totalorder %s26, %s27
      %p41 = scmp.eq.s32.totalorder %s19, 1
      %p42 = por %p40, %p41
      %p44 = scmp.ne.s32.totalorder %s27, %s43
      %p45 = scmp.eq.s32.totalorder %s19, 0
      %p46 = por %p44, %p45
      %s48 = sadd.s32 %s47, 1
      %p51 = scmp.eq.s32.totalorder %s13, 1
      %p52 = scmp.ne.s32.totalorder %s47, %s49
      %p53 = scmp.eq.s32.totalorder %s13, 0
      %p54 = por %p52, %p53
      %p55 = scmp.ne.s32.totalorder %s47, %s49
      %p56 = scmp.eq.s32.totalorder %s18, 1
      %p57 = por %p55, %p56
      %p58 = scmp.ne.s32.totalorder %s49, %s50
      %p59 = scmp.eq.s32.totalorder %s18, 0
      %p60 = por %p58, %p59
      %p61 = scmp.ne.s32.totalorder %s49, %s50
      %p62 = scmp.eq.s32.totalorder %s19, 1
      %p63 = por %p61, %p62
      %p65 = scmp.ne.s32.totalorder %s50, %s64
      %p66 = scmp.eq.s32.totalorder %s19, 0
      %p67 = por %p65, %p66
      %s69 = sadd.s32 %s68, 1
      %p72 = scmp.eq.s32.totalorder %s13, 1
      %p73 = scmp.ne.s32.totalorder %s68, %s70
      %p74 = scmp.eq.s32.totalorder %s13, 0
      %p75 = por %p73, %p74
      %p76 = scmp.ne.s32.totalorder %s68, %s70
      %p77 = scmp.eq.s32.totalorder %s18, 1
      %p78 = por %p76, %p77
      %p79 = scmp.ne.s32.totalorder %s70, %s71
      %p80 = scmp.eq.s32.totalorder %s18, 0
      %p81 = por %p79, %p80
      %p82 = scmp.ne.s32.totalorder %s70, %s71
      %p83 = scmp.eq.s32.totalorder %s19, 1
      %p84 = por %p82, %p83
      %p86 = scmp.ne.s32.totalorder %s71, %s85
      %p87 = scmp.eq.s32.totalorder %s19, 0
      %p88 = por %p86, %p87
      %s90 = sadd.s32 %s89, 1
      %p93 = scmp.eq.s32.totalorder %s13, 1
      %p94 = scmp.ne.s32.totalorder %s89, %s91
      %p95 = scmp.eq.s32.totalorder %s13, 0
      %p96 = por %p94, %p95
      %p97 = scmp.ne.s32.totalorder %s89, %s91
      %p98 = scmp.eq.s32.totalorder %s18, 1
      %p99 = por %p97, %p98
      %p100 = scmp.ne.s32.totalorder %s91, %s92
      %p101 = scmp.eq.s32.totalorder %s18, 0
      %p102 = por %p100, %p101
      %p103 = scmp.ne.s32.totalorder %s91, %s92
      %p104 = scmp.eq.s32.totalorder %s19, 1
      %p105 = por %p103, %p104
      %p107 = scmp.ne.s32.totalorder %s92, %s106
      %p108 = scmp.eq.s32.totalorder %s19, 0
      %p109 = por %p107, %p108
      %s110 = ssub.s32 %s13, %s20
      %p111 = scmp.eq.s32.totalorder %s110, 0
      %s113 = sadd.s32 %s112, 1
      %s114 = scalar_select %p111, %s112, %s113
      %p117 = pneg %p111
      %p118 = scmp.eq.s32.totalorder %s13, 1
      %p119 = por %p117, %p118
      %p120 = scmp.ne.s32.totalorder %s112, %s115
      %p121 = scmp.eq.s32.totalorder %s13, 0
      %p122 = por %p120, %p121
      %p123 = scmp.ne.s32.totalorder %s112, %s115
      %p124 = scmp.eq.s32.totalorder %s18, 1
      %p125 = por %p123, %p124
      %p126 = scmp.ne.s32.totalorder %s115, %s116
      %p127 = scmp.eq.s32.totalorder %s18, 0
      %p128 = por %p126, %p127
      %p129 = scmp.ne.s32.totalorder %s115, %s116
      %p130 = scmp.eq.s32.totalorder %s19, 1
      %p131 = por %p129, %p130
      %p133 = scmp.ne.s32.totalorder %s116, %s132
      %p134 = scmp.eq.s32.totalorder %s19, 0
      %p135 = por %p133, %p134
      %p136 = scmp.le.s32.totalorder 1, %s13
      %p137 = scmp.lt.s32.totalorder %s13, 3
      %p138 = pnand %p136, %p137
      %p139 = pneg %p138
      // Predicated region
      $region9: #{tpu_custom_call.1} parent=5 // pred_check
        _
      $region10: #{tpu_custom_call.1} parent=5 // pred_check_branch
        %141 = sbr.rel (%p138) target = $region12
      $region11: #{tpu_custom_call.1} parent=5 // pred_region
        %s142 = ssub.s32 %s13, 1
        // Predicated region
        $region13: #{tpu_custom_call.1} parent=11 // pred_check
          %p143 = pneg %p60
        $region14: #{tpu_custom_call.1} parent=11 // pred_check_branch
          %145 = sbr.rel (%p143) target = $region16
        $region15: #{tpu_custom_call.1} parent=11 // pred_region
          _
        $region16: #{tpu_custom_call.1} parent=11 // pred_fallthru
          _
        // Predicated region
        $region17: #{tpu_custom_call.1} parent=11 // pred_check
          %p146 = pneg %p81
        $region18: #{tpu_custom_call.1} parent=11 // pred_check_branch
          %148 = sbr.rel (%p146) target = $region20
        $region19: #{tpu_custom_call.1} parent=11 // pred_region
          _
        $region20: #{tpu_custom_call.1} parent=11 // pred_fallthru
          _
        // Predicated region
        $region21: #{tpu_custom_call.1} parent=11 // pred_check
          %p149 = pneg %p102
        $region22: #{tpu_custom_call.1} parent=11 // pred_check_branch
          %151 = sbr.rel (%p149) target = $region24
        $region23: #{tpu_custom_call.1} parent=11 // pred_region
          _
        $region24: #{tpu_custom_call.1} parent=11 // pred_fallthru
          _
      $region12: #{tpu_custom_call.1} parent=5 // pred_fallthru
        _
      %p152 = scmp.lt.s32.totalorder %s13, 2
      // Predicated region
      $region25: #{tpu_custom_call.1} parent=5 // pred_check
        %p153 = pneg %p152
      $region26: #{tpu_custom_call.1} parent=5 // pred_check_branch
        %155 = sbr.rel (%p153) target = $region28
      $region27: #{tpu_custom_call.1} parent=5 // pred_region
        // Predicated region
        $region29: #{tpu_custom_call.1} parent=27 // pred_check
          %p156 = pneg %p33
        $region30: #{tpu_custom_call.1} parent=27 // pred_check_branch
          %158 = sbr.rel (%p156) target = $region32
        $region31: #{tpu_custom_call.1} parent=27 // pred_region
          %p159 = scmp.lt.s32.totalorder %s13, 1
          %s160 = scalar_select %p159, %s13, 1
          %s161 = smul.addr %s160, 2
          %s162 = smul.addr %s161, 4
          %s163 = scalar_lea.vmem %s0, %s162
        $region32: #{tpu_custom_call.1} parent=27 // pred_fallthru
          _
      $region28: #{tpu_custom_call.1} parent=5 // pred_fallthru
        _
      %p164 = scmp.le.s32.totalorder 1, %s13
      %p165 = scmp.lt.s32.totalorder %s13, 3
      %p166 = pnand %p164, %p165
      %p167 = pneg %p166
      // Predicated region
      $region33: #{tpu_custom_call.1} parent=5 // pred_check
        _
      $region34: #{tpu_custom_call.1} parent=5 // pred_check_branch
        %169 = sbr.rel (%p166) target = $region36
      $region35: #{tpu_custom_call.1} parent=5 // pred_region
        %s170 = ssub.s32 %s13, 1
        %p171 = scmp.lt.s32.totalorder %s18, 1
        %s172 = scalar_select %p171, %s18, 1
        %s173 = smul.addr %s172, 2
        %s174 = smul.addr %s173, 4
        %s175 = scalar_lea.vmem %s0, %s174
        %p176 = pneg %p39
        %p177 = pneg %p36
        %p178 = pneg %p60
        %p179 = pneg %p57
        %p180 = pneg %p81
        %p181 = pneg %p78
        %p182 = pneg %p102
        %p183 = pneg %p99
        %p184 = pneg %p128
        %p185 = pneg %p125
        %s186 = sand.u32 %s115, 1
        %s187 = scalar_lea.sflag [#allocation3], %s186
        %s188 = sand.u32 %s115, 1
        %s189 = smul.addr %s188, 8
        %s190 = scalar_lea.vmem [#allocation2], %s189
        %p191 = scmp.lt.s32.totalorder %s18, 1
        %s192 = scalar_select %p191, %s18, 1
        %s193 = smul.addr %s192, 2
        %s194 = smul.addr %s193, 4
        %s195 = scalar_lea.vmem %s0, %s194
        %v196 = vld [vmem:[%s195] sm:$0xff]
        %v197 = vld [vmem:[%s1] sm:$0xf]
        %199 = vset.pattern.permute.xlu0 0
        %200 = vperm.xlu0 %199, %v197
        %v201 = vpop.permute.xlu0 %200
        %v203 = vunpack.c.l.s4 839922192
        %v204 = vunpack.c.0.s8 %v203
        %v205 = vlaneseq
        %v206 = vshrl.u32 %v205, 7
        %v207 = vsub.s32 %v204, %v206
        %v208 = vrot.slane %v201, %v207
        %v210 = vadd.f32 %v196, %v208
        %v211 = vlaneseq
        %v212 = vand.u32 %v211, 127
        %v213 = vadd.s32 %v212, 128
        %v214 = vshra.s32 %v212, 4
        %v215 = vshra.s32 %v213, 4
        %v216 = vand.u32 %v212, 15
        %v217 = vand.u32 %v213, 15
        %v219 = vcombine.high %v210, %v210
        %221 = vrot.lane.b32.xlu0 %v210, 17
        %v222 = vpop.permute.xlu0 %221
        %223 = vrot.lane.b32.xlu0 %v219, 17
        %v224 = vpop.permute.xlu0 %223
        %vm225 = vcmp.lt.s32.totalorder %v212, 17
        %v226 = vsel %vm225, %v222, %v224
        %v227 = vsel %vm225, %v224, %v222
        %vm228 = vcmp.ge.s32.totalorder %v214, 1
        %vm229 = vcmp.ge.s32.totalorder %v215, 1
        %vm230 = vcmp.ge.s32.totalorder %v216, 1
        %vm231 = vcmp.ge.s32.totalorder %v217, 1
        %vm232 = vmand %vm228, %vm230
        %vm233 = vmand %vm229, %vm231
        %v234 = vsel %vm232, 1, 0
        %v235 = vsel %vm233, 1, 0
        %vm236 = vcmp.eq.s32.totalorder %v234, 1
        %vm237 = vcmp.eq.s32.totalorder %v235, 1
        %v238 = vsel %vm236, %v227, 0.0
        %v239 = vsel %vm237, %v226, 0.0
        %v240 = vld [vmem:[%s2] sm:$0xf]
        %242 = vset.pattern.permute.xlu0 0
        %243 = vperm.xlu0 %242, %v240
        %v244 = vpop.permute.xlu0 %243
        %v246 = vmul.f32 %v238, %v244
        %v247 = vmul.f32 %v239, %v244
        %248 = vrot.lane.b32.xlu0 %v210, 16
        %v249 = vpop.permute.xlu0 %248
        %250 = vrot.lane.b32.xlu0 %v219, 16
        %v251 = vpop.permute.xlu0 %250
        %vm252 = vcmp.lt.s32.totalorder %v212, 16
        %v253 = vsel %vm252, %v249, %v251
        %v254 = vsel %vm252, %v251, %v249
        %v255 = vsel %vm228, 1, 0
        %v256 = vsel %vm229, 1, 0
        %vm257 = vcmp.eq.s32.totalorder %v255, 1
        %vm258 = vcmp.eq.s32.totalorder %v256, 1
        %v259 = vsel %vm257, %v254, 0.0
        %v260 = vsel %vm258, %v253, 0.0
        %s261 = scalar_lea.vmem %s2, 4
        %v262 = vld [vmem:[%s261] sm:$0xf]
        %264 = vset.pattern.permute.xlu0 0
        %265 = vperm.xlu0 %264, %v262
        %v266 = vpop.permute.xlu0 %265
        %v268 = vmul.f32 %v259, %v266
        %v269 = vmul.f32 %v260, %v266
        %v270 = vadd.f32 %v246, %v268
        %v271 = vadd.f32 %v247, %v269
        %272 = vrot.lane.b32.xlu0 %v210, 15
        %v273 = vpop.permute.xlu0 %272
        %274 = vrot.lane.b32.xlu0 %v219, 15
        %v275 = vpop.permute.xlu0 %274
        %vm276 = vcmp.lt.s32.totalorder %v212, 15
        %v277 = vsel %vm276, %v273, %v275
        %v278 = vsel %vm276, %v275, %v273
        %vm279 = vcmp.lt.s32.totalorder %v216, 15
        %vm280 = vcmp.lt.s32.totalorder %v217, 15
        %vm281 = vmand %vm228, %vm279
        %vm282 = vmand %vm229, %vm280
        %v283 = vsel %vm281, 1, 0
        %v284 = vsel %vm282, 1, 0
        %vm285 = vcmp.eq.s32.totalorder %v283, 1
        %vm286 = vcmp.eq.s32.totalorder %v284, 1
        %v287 = vsel %vm285, %v278, 0.0
        %v288 = vsel %vm286, %v277, 0.0
        %s289 = scalar_lea.vmem %s2, 8
        %v290 = vld [vmem:[%s289] sm:$0xf]
        %292 = vset.pattern.permute.xlu0 0
        %293 = vperm.xlu0 %292, %v290
        %v294 = vpop.permute.xlu0 %293
        %v296 = vmul.f32 %v287, %v294
        %v297 = vmul.f32 %v288, %v294
        %v298 = vadd.f32 %v270, %v296
        %v299 = vadd.f32 %v271, %v297
        %300 = vrot.lane.b32.xlu0 %v210, 1
        %v301 = vpop.permute.xlu0 %300
        %302 = vrot.lane.b32.xlu0 %v219, 1
        %v303 = vpop.permute.xlu0 %302
        %vm304 = vcmp.lt.s32.totalorder %v212, 1
        %v305 = vsel %vm304, %v301, %v303
        %v306 = vsel %vm304, %v303, %v301
        %v307 = vsel %vm230, 1, 0
        %v308 = vsel %vm231, 1, 0
        %vm309 = vcmp.eq.s32.totalorder %v307, 1
        %vm310 = vcmp.eq.s32.totalorder %v308, 1
        %v311 = vsel %vm309, %v306, 0.0
        %v312 = vsel %vm310, %v305, 0.0
        %s313 = scalar_lea.vmem %s2, 12
        %v314 = vld [vmem:[%s313] sm:$0xf]
        %316 = vset.pattern.permute.xlu0 0
        %317 = vperm.xlu0 %316, %v314
        %v318 = vpop.permute.xlu0 %317
        %v320 = vmul.f32 %v311, %v318
        %v321 = vmul.f32 %v312, %v318
        %v322 = vadd.f32 %v298, %v320
        %v323 = vadd.f32 %v299, %v321
        %s324 = scalar_lea.vmem %s2, 16
        %v325 = vld [vmem:[%s324] sm:$0xf]
        %327 = vset.pattern.permute.xlu0 0
        %328 = vperm.xlu0 %327, %v325
        %v329 = vpop.permute.xlu0 %328
        %v331 = vunpack.c.l.s4 839922192
        %v332 = vunpack.c.0.s8 %v331
        %v333 = vlaneseq
        %v334 = vshrl.u32 %v333, 7
        %v335 = vsub.s32 %v332, %v334
        %v336 = vrot.slane %v329, %v335
        %v338 = vmul.f32 %v210, %v336
        %v340 = vcombine.high %v338, %v338
        %v342 = vadd.f32 %v322, %v338
        %v343 = vadd.f32 %v323, %v340
        %344 = vrot.lane.b32.xlu0 %v210, 127
        %v345 = vpop.permute.xlu0 %344
        %346 = vrot.lane.b32.xlu0 %v219, 127
        %v347 = vpop.permute.xlu0 %346
        %vm348 = vcmp.lt.s32.totalorder %v212, 127
        %v349 = vsel %vm348, %v345, %v347
        %v350 = vsel %vm348, %v347, %v345
        %v351 = vsel %vm279, 1, 0
        %v352 = vsel %vm280, 1, 0
        %vm353 = vcmp.eq.s32.totalorder %v351, 1
        %vm354 = vcmp.eq.s32.totalorder %v352, 1
        %v355 = vsel %vm353, %v349, 0.0
        %v356 = vsel %vm354, %v350, 0.0
        %s357 = scalar_lea.vmem %s2, 20
        %v358 = vld [vmem:[%s357] sm:$0xf]
        %360 = vset.pattern.permute.xlu0 0
        %361 = vperm.xlu0 %360, %v358
        %v362 = vpop.permute.xlu0 %361
        %v364 = vmul.f32 %v355, %v362
        %v365 = vmul.f32 %v356, %v362
        %v366 = vadd.f32 %v342, %v364
        %v367 = vadd.f32 %v343, %v365
        %368 = vrot.lane.b32.xlu0 %v210, 113
        %v369 = vpop.permute.xlu0 %368
        %370 = vrot.lane.b32.xlu0 %v219, 113
        %v371 = vpop.permute.xlu0 %370
        %vm372 = vcmp.lt.s32.totalorder %v212, 113
        %v373 = vsel %vm372, %v369, %v371
        %v374 = vsel %vm372, %v371, %v369
        %vm375 = vcmp.lt.s32.totalorder %v214, 15
        %vm376 = vcmp.lt.s32.totalorder %v215, 15
        %vm377 = vmand %vm375, %vm230
        %vm378 = vmand %vm376, %vm231
        %v379 = vsel %vm377, 1, 0
        %v380 = vsel %vm378, 1, 0
        %vm381 = vcmp.eq.s32.totalorder %v379, 1
        %vm382 = vcmp.eq.s32.totalorder %v380, 1
        %v383 = vsel %vm381, %v373, 0.0
        %v384 = vsel %vm382, %v374, 0.0
        %s385 = scalar_lea.vmem %s2, 24
        %v386 = vld [vmem:[%s385] sm:$0xf]
        %388 = vset.pattern.permute.xlu0 0
        %389 = vperm.xlu0 %388, %v386
        %v390 = vpop.permute.xlu0 %389
        %v392 = vmul.f32 %v383, %v390
        %v393 = vmul.f32 %v384, %v390
        %v394 = vadd.f32 %v366, %v392
        %v395 = vadd.f32 %v367, %v393
        %396 = vrot.lane.b32.xlu0 %v210, 112
        %v397 = vpop.permute.xlu0 %396
        %398 = vrot.lane.b32.xlu0 %v219, 112
        %v399 = vpop.permute.xlu0 %398
        %vm400 = vcmp.lt.s32.totalorder %v212, 112
        %v401 = vsel %vm400, %v397, %v399
        %v402 = vsel %vm400, %v399, %v397
        %v403 = vsel %vm375, 1, 0
        %v404 = vsel %vm376, 1, 0
        %vm405 = vcmp.eq.s32.totalorder %v403, 1
        %vm406 = vcmp.eq.s32.totalorder %v404, 1
        %v407 = vsel %vm405, %v401, 0.0
        %v408 = vsel %vm406, %v402, 0.0
        %s409 = scalar_lea.vmem %s2, 28
        %v410 = vld [vmem:[%s409] sm:$0xf]
        %412 = vset.pattern.permute.xlu0 0
        %413 = vperm.xlu0 %412, %v410
        %v414 = vpop.permute.xlu0 %413
        %v416 = vmul.f32 %v407, %v414
        %v417 = vmul.f32 %v408, %v414
        %v418 = vadd.f32 %v394, %v416
        %v419 = vadd.f32 %v395, %v417
        %420 = vrot.lane.b32.xlu0 %v210, 111
        %v421 = vpop.permute.xlu0 %420
        %422 = vrot.lane.b32.xlu0 %v219, 111
        %v423 = vpop.permute.xlu0 %422
        %vm424 = vcmp.lt.s32.totalorder %v212, 111
        %v425 = vsel %vm424, %v421, %v423
        %v426 = vsel %vm424, %v423, %v421
        %vm427 = vmand %vm375, %vm279
        %vm428 = vmand %vm376, %vm280
        %v429 = vsel %vm427, 1, 0
        %v430 = vsel %vm428, 1, 0
        %vm431 = vcmp.eq.s32.totalorder %v429, 1
        %vm432 = vcmp.eq.s32.totalorder %v430, 1
        %v433 = vsel %vm431, %v425, 0.0
        %v434 = vsel %vm432, %v426, 0.0
        %s435 = scalar_lea.vmem %s2, 32
        %v436 = vld [vmem:[%s435] sm:$0xf]
        %438 = vset.pattern.permute.xlu0 0
        %439 = vperm.xlu0 %438, %v436
        %v440 = vpop.permute.xlu0 %439
        %v442 = vmul.f32 %v433, %v440
        %v443 = vmul.f32 %v434, %v440
        %v444 = vadd.f32 %v418, %v442
        %v445 = vadd.f32 %v419, %v443
        %v446 = vld [vmem:[%s3] sm:$0xf]
        %448 = vset.pattern.permute.xlu0 0
        %449 = vperm.xlu0 %448, %v446
        %v450 = vpop.permute.xlu0 %449
        %v452 = vlaneseq
        %v453 = vshrl.u32 %v452, 7
        %v454 = vsub.s32 0, %v453
        %v455 = vrot.slane %v444, %v454
        %v456 = vlaneseq
        %v457 = vshrl.u32 %v456, 7
        %v458 = vsub.s32 0, %v457
        %v459 = vrot.slane %v445, %v458
        %v460 = vmul.f32 %v450, %v455
        %v461 = vmul.f32 %v450, %v459
        %s462 = scalar_lea.vmem %s3, 4
        %v463 = vld [vmem:[%s462] sm:$0xf]
        %465 = vset.pattern.permute.xlu0 0
        %466 = vperm.xlu0 %465, %v463
        %v467 = vpop.permute.xlu0 %466
        %v469 = vlaneseq
        %v470 = vshrl.u32 %v469, 7
        %v471 = vsub.s32 1, %v470
        %v472 = vrot.slane %v444, %v471
        %v473 = vlaneseq
        %v474 = vshrl.u32 %v473, 7
        %v475 = vsub.s32 1, %v474
        %v476 = vrot.slane %v445, %v475
        %v477 = vmul.f32 %v467, %v472
        %v478 = vmul.f32 %v467, %v476
        %v479 = vadd.f32 %v460, %v477
        %v480 = vadd.f32 %v461, %v478
        %s481 = scalar_lea.vmem %s3, 8
        %v482 = vld [vmem:[%s481] sm:$0xf]
        %484 = vset.pattern.permute.xlu0 0
        %485 = vperm.xlu0 %484, %v482
        %v486 = vpop.permute.xlu0 %485
        %v488 = vlaneseq
        %v489 = vshrl.u32 %v488, 7
        %v490 = vsub.s32 2, %v489
        %v491 = vrot.slane %v444, %v490
        %v492 = vlaneseq
        %v493 = vshrl.u32 %v492, 7
        %v494 = vsub.s32 2, %v493
        %v495 = vrot.slane %v445, %v494
        %v496 = vmul.f32 %v486, %v491
        %v497 = vmul.f32 %v486, %v495
        %v498 = vadd.f32 %v479, %v496
        %v499 = vadd.f32 %v480, %v497
        %s500 = scalar_lea.vmem %s3, 12
        %v501 = vld [vmem:[%s500] sm:$0xf]
        %503 = vset.pattern.permute.xlu0 0
        %504 = vperm.xlu0 %503, %v501
        %v505 = vpop.permute.xlu0 %504
        %v507 = vlaneseq
        %v508 = vshrl.u32 %v507, 7
        %v509 = vsub.s32 3, %v508
        %v510 = vrot.slane %v444, %v509
        %v511 = vlaneseq
        %v512 = vshrl.u32 %v511, 7
        %v513 = vsub.s32 3, %v512
        %v514 = vrot.slane %v445, %v513
        %v515 = vmul.f32 %v505, %v510
        %v516 = vmul.f32 %v505, %v514
        %v517 = vadd.f32 %v498, %v515
        %v518 = vadd.f32 %v499, %v516
        %v519 = vmax.f32 %v517, 0.0
        %v520 = vmax.f32 %v518, 0.0
        %v523 = vcombine.low %v519, %v520
        %525 = vst [vmem:[%s190] sm:$0xff] %v523
        %s526 = sand.u32 %s115, 1
        %s527 = scalar_lea.sflag [#allocation3], %s526
        %s528 = sand.u32 %s115, 1
        %s529 = smul.addr %s528, 8
        %s530 = scalar_lea.vmem [#allocation2], %s529
        // Predicated region
        $region37: #{tpu_custom_call.1} parent=35 // pred_check
          %p531 = pneg %p125
        $region38: #{tpu_custom_call.1} parent=35 // pred_check_branch
          %533 = sbr.rel (%p531) target = $region40
        $region39: #{tpu_custom_call.1} parent=35 // pred_region
          %s535 = ssub.s32 128, 128
          %536 = vsyncadd %s527, %s535
          %s537 = smul.addr %s18, 2
          %s538 = smul.addr %s537, 64
          %s539 = scalar_lea.hbm %s4, %s538
          %s541 = sshll.u32 %s530, 4
          %s542 = int_to_ptr.vmem [resolvable:$true] %s541
          %544 = dma.vmem_to_hbm [thread:$0]  %s542, 128, %s539, %s527
        $region40: #{tpu_custom_call.1} parent=35 // pred_fallthru
          _
      $region36: #{tpu_custom_call.1} parent=5 // pred_fallthru
        _
      %p545 = scmp.le.s32.totalorder 2, %s13
      // Predicated region
      $region41: #{tpu_custom_call.1} parent=5 // pred_check
        %p546 = pneg %p545
      $region42: #{tpu_custom_call.1} parent=5 // pred_check_branch
        %548 = sbr.rel (%p546) target = $region44
      $region43: #{tpu_custom_call.1} parent=5 // pred_region
        %s549 = ssub.s32 %s13, 2
        // Predicated region
        $region45: #{tpu_custom_call.1} parent=43 // pred_check
          %p550 = pneg %p131
        $region46: #{tpu_custom_call.1} parent=43 // pred_check_branch
          %552 = sbr.rel (%p550) target = $region48
        $region47: #{tpu_custom_call.1} parent=43 // pred_region
          %s553 = sand.u32 %s116, 1
          %s554 = scalar_lea.sflag [#allocation3], %s553
          %s555 = sand.u32 %s116, 1
          %s556 = smul.addr %s555, 8
          %s557 = scalar_lea.vmem [#allocation2], %s556
          %558 = dma.done %s554, 128
        $region48: #{tpu_custom_call.1} parent=43 // pred_fallthru
          _
      $region44: #{tpu_custom_call.1} parent=5 // pred_fallthru
        _
    $region6: #{tpu_custom_call.1} parent=1 // loop_footer
      %s17 = sadd.s32 1, %s13
    $region7: #{tpu_custom_call.1} parent=1 // loop_footer_branch
      %12 = sbr.rel target = $region3
    $region8: #{tpu_custom_call.1} parent=1 // loop_exit
      _
    %559 = vsyncpa [#allocation3], 1
    %s560 = scalar_lea.sflag [#allocation3], 1
    %561 = vsyncpa %s560, 1

</llo_original>
